<compile_context>
chip_gen: v5e
topology: v5e:2x2
jax: 0.10.0
libtpu: 0.0.40
codegen_flags: <defaults>
</compile_context>

<pallas_src>
import jax
import jax.numpy as jnp
from jax.experimental import pallas as pl
from jax.experimental.pallas import tpu as pltpu


def _tanh_prime_kernel(z_ref, o_ref):
    # f32 compute path: safe on v5e (no bf16 VPU/EUP) and handles int inputs.
    # The cast rides free on spare VPU slots since the kernel is DMA-bound.
    z = z_ref[...].astype(jnp.float32)
    t = jnp.tanh(z)
    o_ref[...] = (1.0 - t * t).astype(o_ref.dtype)


_LANE_CANDIDATES = (2048, 1024, 512, 256, 128)      # lane-dense widths (multiples of 128)
_TARGET_BLOCK_BYTES = 6 * 1024 * 1024               # ~6 MiB per buffer (dbl-buf in+out ~24 MiB)
_MIN_SPLIT_BLOCK_BYTES = 2 * 1024 * 1024            # never shrink below this to add grid steps
_VMEM_LIMIT_BYTES = 48 * 1024 * 1024                # explicit: above scoped defaults, < v7x 64 MiB


def _sublane_floor(dtype) -> int:
    # packed min-tile row counts: (8,128) f32, (16,128) bf16/f16, (32,128) int8/fp8
    return {4: 8, 2: 16, 1: 32}.get(jnp.dtype(dtype).itemsize, 8)


def _tanh_prime_2d(z2d: jax.Array, out_dtype) -> jax.Array:
    """Run the Pallas kernel on a lane-dense (rows, C) slab."""
    rows, C = z2d.shape
    in_itemsize = jnp.dtype(z2d.dtype).itemsize
    out_itemsize = jnp.dtype(out_dtype).itemsize
    max_itemsize = max(in_itemsize, out_itemsize)
    sub = max(_sublane_floor(z2d.dtype), _sublane_floor(out_dtype))

    # --- big, sublane-aligned row tiles; never shrink to vreg-sized blocks ---
    rows_per_block = max(1, _TARGET_BLOCK_BYTES // (C * max_itemsize))
    tile_r = min(rows, rows_per_block)
    tile_r = max(sub, (tile_r // sub) * sub)
    if tile_r > rows:
        tile_r = rows                                 # block == full extent (always legal)
    grid_r = pl.cdiv(rows, tile_r)

    # --- core/pipeline-aware split: aim for >= 4 steps (2 per v7x TC plus
    #     prologue/epilogue overlap) but only if blocks stay >= ~2 MiB so we
    #     never trade overhead amortization for grid steps on v5e/v6e. ---
    if grid_r < 4 and rows >= 4 * sub:
        cand = max(sub, ((rows // 4) // sub) * sub)
        if cand * C * max_itemsize >= _MIN_SPLIT_BLOCK_BYTES:
            tile_r = cand
            grid_r = pl.cdiv(rows, tile_r)

    n_elems = rows * C
    return pl.pallas_call(
        _tanh_prime_kernel,
        out_shape=jax.ShapeDtypeStruct((rows, C), out_dtype),
        grid_spec=pltpu.PrefetchScalarGridSpec(
            num_scalar_prefetch=0,
            grid=(grid_r,),
            # Ragged last block (rows % tile_r != 0) uses Pallas' masked
            # partial writeback: out-of-range rows may carry garbage through
            # tanh but are never stored.
            in_specs=[pl.BlockSpec((tile_r, C), lambda i: (i, 0))],
            out_specs=pl.BlockSpec((tile_r, C), lambda i: (i, 0)),
        ),
        compiler_params=pltpu.CompilerParams(
            dimension_semantics=("parallel",),
            vmem_limit_bytes=_VMEM_LIMIT_BYTES),
        cost_estimate=pl.CostEstimate(
            flops=3 * n_elems,
            transcendentals=n_elems,
            bytes_accessed=n_elems * (in_itemsize + out_itemsize)),
    )(z2d)


def tanh_prime(z: jax.Array) -> jax.Array:
    """Elementwise 1 - tanh(z)^2 via a Pallas TPU kernel.

    Floating inputs keep their dtype; non-floating inputs are cast to float32
    inside the kernel and the result is returned as float32.
    """
    orig_shape = z.shape
    out_dtype = z.dtype if jnp.issubdtype(z.dtype, jnp.floating) else jnp.float32
    n = z.size
    if n == 0:
        return jnp.zeros(orig_shape, out_dtype)

    sub = max(_sublane_floor(z.dtype), _sublane_floor(out_dtype))

    # --- pick a lane-dense column count C (multiple of 128) ---
    C = None
    for c in _LANE_CANDIDATES:            # prefer: divides n AND leaves >= 2*sub rows
        if n % c == 0 and (n // c) >= 2 * sub:
            C = c
            break
    if C is None:
        for c in _LANE_CANDIDATES:        # next best: divides n (no tail at all)
            if n % c == 0:
                C = c
                break

    z_flat = jnp.ravel(z)

    if C is not None:
        out2d = _tanh_prime_2d(z_flat.reshape(n // C, C), out_dtype)
        return out2d.reshape(orig_shape)

    # Fallback (no candidate divides n): kernel on the 128-aligned head, plain
    # jnp on the <128-element tail. O(C) tail work instead of an O(n)
    # pad + slice (which would add ~2 full HBM passes to a mem-bound op).
    C = 128
    main = (n // C) * C
    parts = []
    if main:
        out_main = _tanh_prime_2d(z_flat[:main].reshape(main // C, C), out_dtype)
        parts.append(out_main.reshape(-1))
    t = jnp.tanh(z_flat[main:].astype(jnp.float32))
    parts.append((1.0 - t * t).astype(out_dtype))
    out_flat = jnp.concatenate(parts) if len(parts) > 1 else parts[0]
    return out_flat.reshape(orig_shape)


if __name__ == "__main__":
    key = jax.random.PRNGKey(0)
    x = jax.random.normal(key, (2, 4, 16, 16), dtype=jnp.float32)

    y = tanh_prime(x)
    y = jax.block_until_ready(y)

    # reference check
    y_ref = 1.0 - jnp.tanh(x) ** 2
    assert y.shape == x.shape and y.dtype == x.dtype
    assert jnp.allclose(y, y_ref, atol=1e-6, rtol=1e-6)

    print("KERNEL_OK")
</pallas_src>

<mosaic_0001>
module attributes {stable_mosaic.version = 11 : i64} {
  func.func @_tanh_prime_kernel(%arg0: i32, %arg1: memref<16x128xf32, #tpu.memory_space<vmem>>, %arg2: memref<16x128xf32, #tpu.memory_space<vmem>>) attributes {dimension_semantics = [#tpu.dimension_semantics<parallel>], iteration_bounds = array<i64: 1>, scalar_prefetch = 0 : i64, scratch_operands = 0 : i64, tpu.core_type = #tpu.core_type<tc>, window_params = [{transform_indices = @transform_0, window_bounds = array<i64: 16, 128>}, {transform_indices = @transform_1, window_bounds = array<i64: 16, 128>}]} {
    %c0 = arith.constant 0 : index
    %c0_0 = arith.constant 0 : index
    %0 = vector.load %arg1[%c0, %c0_0] : memref<16x128xf32, #tpu.memory_space<vmem>>, vector<16x128xf32>
    %1 = math.tanh %0 : vector<16x128xf32>
    %2 = arith.mulf %1, %1 : vector<16x128xf32>
    %cst = arith.constant 1.000000e+00 : f32
    %3 = vector.broadcast %cst : f32 to vector<16x128xf32>
    %4 = arith.subf %3, %2 : vector<16x128xf32>
    %c0_1 = arith.constant 0 : index
    %c0_2 = arith.constant 0 : index
    %5 = vector.load %arg2[%c0_1, %c0_2] : memref<16x128xf32, #tpu.memory_space<vmem>>, vector<16x128xf32>
    tpu.vector_store %arg2[%c0_1, %c0_2], %4 {strides = array<i32>} : memref<16x128xf32, #tpu.memory_space<vmem>>, vector<16x128xf32>,
    return
  }
  func.func @transform_0(%arg0: i32) -> (i32, i32) {
    %c0_i32 = arith.constant 0 : i32
    %c0_i32_0 = arith.constant 0 : i32
    return %arg0, %c0_i32 : i32, i32
  }
  func.func @transform_1(%arg0: i32) -> (i32, i32) {
    %c0_i32 = arith.constant 0 : i32
    %c0_i32_0 = arith.constant 0 : i32
    return %arg0, %c0_i32 : i32, i32
  }
}

</mosaic_0001>

<llo_original>
// kernel: tpu_custom_call.1
$region0: #{tpu_custom_call.1}
  #allocation0 [shape = 'u32[]', space=smem, size = 0x4, offset = 0x4, fixed_abs, tag = 'smem constant byte address 0x4 - core index']
  #allocation1 [shape = 'u32[72,128]{1,0:T(1,128)}', space=vmem, size = 0x9000, scoped, tag = 'internal scratch']
  %s0 = inlined_call_operand.hbm [shape: f32[16,128], index: 0, kind: input, shape index: {}]
  %s1 = inlined_call_operand.hbm [shape: f32[16,128], index: 1, kind: output, shape index: {}]
  %s2 = sld [smem:[#allocation0]]
  $region18: #{tpu_custom_call.1} parent=0
    _
  %s4 = ssub.s32 1, %s2
  %s5 = scalar_select 0, %s4, %s2
  $region1: #{tpu_custom_call.1} parent=0
    #allocation2 [shape = 'u8[8192]{0}', space=vmem, size = 0x2000, scoped, tag = 'input window, operand 0, single buffered']
    #allocation3 [shape = 's32[1]{0}', space=sflag, size = 0x4, scoped, tag = 'scoped memory for tpu_custom_call.1']
    #allocation4 [shape = 's32[1]{0}', space=sflag, size = 0x4, scoped, tag = 'scoped memory for tpu_custom_call.1']
    #allocation5 [shape = 'u8[8192]{0}', space=vmem, size = 0x2000, scoped, tag = 'output window, operand 0, single buffered']
    %6 = vsyncpa [#allocation3], 0
    %7 = vsyncpa [#allocation4], 0
    // Predicated region
    $region2: #{tpu_custom_call.1} parent=1 // pred_check
      _
    $region3: #{tpu_custom_call.1} parent=1 // pred_check_branch
      %9 = sbr.rel (0) target = $region5
    $region4: #{tpu_custom_call.1} parent=1 // pred_region
      %11 = vsyncadd [#allocation3], 0
      %s12 = sshll.u32 %s0, 4
      %s13 = int_to_ptr.hbm [resolvable:$true] %s12
      %s14 = sshll.u32 [#allocation2], 4
      %s15 = int_to_ptr.vmem [resolvable:$true] %s14
      %20 = dma.hbm_to_vmem [thread:$0]  %s13, 256, %s15, [#allocation3], 128, 128, 8
    $region5: #{tpu_custom_call.1} parent=1 // pred_fallthru
      _
    // Predicated region
    $region6: #{tpu_custom_call.1} parent=1 // pred_check
      _
    $region7: #{tpu_custom_call.1} parent=1 // pred_check_branch
      %22 = sbr.rel (0) target = $region9
    $region8: #{tpu_custom_call.1} parent=1 // pred_region
      %24 = dma.done [#allocation3], 256
    $region9: #{tpu_custom_call.1} parent=1 // pred_fallthru
      _
    %v25 = vld [vmem:[#allocation2] sm:$0xff]
    %v26 = vld [vmem:[#allocation2 + $0x8] sm:$0xff]
    %v27 = vtanh.pop %v25
    %v28 = vtanh.pop %v26
    %v29 = vmul.f32 %v27, %v27
    %v30 = vmul.f32 %v28, %v28
    %v31 = vsub.f32 1.0, %v29
    %v32 = vsub.f32 1.0, %v30
    %33 = vst [vmem:[#allocation5] sm:$0xff] %v31
    %34 = vst [vmem:[#allocation5 + $0x8] sm:$0xff] %v32
    // Predicated region
    $region10: #{tpu_custom_call.1} parent=1 // pred_check
      _
    $region11: #{tpu_custom_call.1} parent=1 // pred_check_branch
      %36 = sbr.rel (0) target = $region13
    $region12: #{tpu_custom_call.1} parent=1 // pred_region
      %38 = vsyncadd [#allocation4], 0
      %s39 = sshll.u32 [#allocation5], 4
      %s40 = int_to_ptr.vmem [resolvable:$true] %s39
      %s41 = sshll.u32 %s1, 4
      %s42 = int_to_ptr.hbm [resolvable:$true] %s41
      %47 = dma.vmem_to_hbm [thread:$0]  %s40, 256, %s42, [#allocation4], 128, 128, 8
    $region13: #{tpu_custom_call.1} parent=1 // pred_fallthru
      _
    // Predicated region
    $region14: #{tpu_custom_call.1} parent=1 // pred_check
      _
    $region15: #{tpu_custom_call.1} parent=1 // pred_check_branch
      %49 = sbr.rel (0) target = $region17
    $region16: #{tpu_custom_call.1} parent=1 // pred_region
      %51 = dma.done [#allocation4], 256
    $region17: #{tpu_custom_call.1} parent=1 // pred_fallthru
      _
    %52 = vsyncpa [#allocation3], 1
    %53 = vsyncpa [#allocation4], 1

</llo_original>
